<compile_context>
chip_gen: v7x
topology: tpu7x:2x2x1
jax: 0.10.0
libtpu: 0.0.40
codegen_flags: <defaults>
</compile_context>

<pallas_src>
import functools
import math

import jax
import jax.numpy as jnp
from jax import lax
from jax.experimental import pallas as pl
from jax.experimental.pallas import tpu as pltpu

LANES = 128
MAX_BLOCK_ROWS = 4096          # 4096 * 128 * 4 B = 2 MiB per f32 input block
_LN2 = math.log(2.0)
_EPS = 1e-12


def _logcosh_kernel(yt_ref, yp_ref, out_ref, acc_ref, *,
                    block_rows, tail_valid, need_mask):
    j = pl.program_id(0)
    nj = pl.num_programs(0)

    @pl.when(j == 0)
    def _init():
        acc_ref[...] = jnp.zeros_like(acc_ref)

    yt = yt_ref[...].astype(jnp.float32)
    yp = yp_ref[...].astype(jnp.float32)
    d = (yt - yp) + jnp.float32(_EPS)
    a = jnp.abs(d)
    # log(cosh(x)) == |x| + log1p(exp(-2|x|)) - log(2)   (stable, 2 EUP ops)
    vals = a + jnp.log1p(jnp.exp(jnp.float32(-2.0) * a)) - jnp.float32(_LN2)

    def _accumulate(v):
        # Fold the block to (8, LANES) with vreg-wise adds (leading, non-tiled
        # axis reduction -> pure VPU), then add into the tiny accumulator.
        if block_rows % 8 == 0:
            acc_ref[...] = acc_ref[...] + v.reshape(
                block_rows // 8, 8, LANES).sum(axis=0)
        else:
            # Tiny / unaligned single-block case: one sublane reduce.
            acc_ref[0:1, :] = acc_ref[0:1, :] + v.sum(axis=0, keepdims=True)

    if need_mask:
        # Only the LAST block can contain padded / out-of-bounds elements.
        @pl.when(j == nj - 1)
        def _acc_tail():
            row = lax.broadcasted_iota(jnp.int32, (block_rows, LANES), 0)
            lane = lax.broadcasted_iota(jnp.int32, (block_rows, LANES), 1)
            local = row * LANES + lane               # block-local index, small
            _accumulate(jnp.where(local < tail_valid, vals, jnp.float32(0.0)))

        @pl.when(j < nj - 1)
        def _acc_body():
            _accumulate(vals)
    else:
        _accumulate(vals)

    @pl.when(j == nj - 1)
    def _finalize():
        # Finish the reduction in-kernel: cross-lane reduce (XLU, free slot
        # here) then sublane reduce -> a single f32 written once.
        col = jnp.sum(acc_ref[...], axis=1, keepdims=True)   # (8, 1)
        out_ref[...] = jnp.sum(col, axis=0, keepdims=True)   # (1, 1)


def log_cosh_loss(y_t, y_prime_t):
    """Pallas implementation of LogCoshLoss.forward. Returns an f32 scalar."""
    assert y_t.shape == y_prime_t.shape
    n = int(y_t.size)
    assert n > 0

    rows = pl.cdiv(n, LANES)          # number of 128-lane rows (Python int)
    n_pad = rows * LANES              # pad <= 127 elements, often == n

    # Block equals the full row extent when it fits (always tile-legal), else
    # a large aligned block; 4096 is a multiple of 32 so it is legal for any
    # input dtype packing (f32/bf16/int8/fp8).
    block_rows = rows if rows <= MAX_BLOCK_ROWS else MAX_BLOCK_ROWS
    num_blocks = pl.cdiv(rows, block_rows)
    block_elems = block_rows * LANES

    # Number of REAL elements in the final grid block (static Python int).
    tail_valid = n - (num_blocks - 1) * block_elems
    need_mask = tail_valid != block_elems

    def _prep(x):
        flat = x.reshape(-1)                      # no-copy for contiguous input
        if n_pad != n:                            # at most 127 extra elements
            flat = jnp.pad(flat, (0, n_pad - n))
        return flat.reshape(rows, LANES)

    yt2d = _prep(y_t)
    yp2d = _prep(y_prime_t)

    kernel = functools.partial(
        _logcosh_kernel,
        block_rows=block_rows,
        tail_valid=tail_valid,
        need_mask=need_mask,
    )

    in_spec = pl.BlockSpec((block_rows, LANES), lambda j: (j, 0))

    total = pl.pallas_call(
        kernel,
        out_shape=jax.ShapeDtypeStruct((1, 1), jnp.float32),
        grid_spec=pltpu.PrefetchScalarGridSpec(
            num_scalar_prefetch=0,
            grid=(num_blocks,),
            in_specs=[in_spec, in_spec],
            out_specs=pl.BlockSpec((1, 1), lambda j: (0, 0)),
            scratch_shapes=[pltpu.VMEM((8, LANES), jnp.float32)],
        ),
        compiler_params=pltpu.CompilerParams(
            dimension_semantics=("arbitrary",),
            vmem_limit_bytes=32 * 1024 * 1024,
        ),
    )(yt2d, yp2d)

    # Multiply by a precomputed reciprocal instead of dividing.
    return total[0, 0] * jnp.float32(1.0 / n)


if __name__ == "__main__":
    key = jax.random.PRNGKey(0)
    k1, k2 = jax.random.split(key)
    shape = (2, 4, 16, 16)  # NCHW-like example input
    y_t = jax.random.normal(k1, shape, dtype=jnp.float32)
    y_p = jax.random.normal(k2, shape, dtype=jnp.float32)

    loss = jax.block_until_ready(log_cosh_loss(y_t, y_p))

    # Reference check in plain JAX.
    ref = jnp.mean(jnp.log(jnp.cosh((y_t - y_p) + 1e-12)))
    assert jnp.allclose(loss, ref, atol=1e-5, rtol=1e-5), (loss, ref)

    print("KERNEL_OK")
</pallas_src>

<mosaic_0001>
module attributes {stable_mosaic.version = 11 : i64} {
  func.func @_logcosh_kernel(%arg0: i32, %arg1: memref<16x128xf32, #tpu.memory_space<vmem>>, %arg2: memref<16x128xf32, #tpu.memory_space<vmem>>, %arg3: memref<1x1xf32, #tpu.memory_space<vmem>>, %arg4: memref<8x128xf32, #tpu.memory_space<vmem>>) attributes {dimension_semantics = [#tpu.dimension_semantics<arbitrary>], iteration_bounds = array<i64: 1>, scalar_prefetch = 0 : i64, scratch_operands = 1 : i64, tpu.core_type = #tpu.core_type<tc>, window_params = [{transform_indices = @transform_0, window_bounds = array<i64: 16, 128>}, {transform_indices = @transform_1, window_bounds = array<i64: 16, 128>}, {pipeline_mode = #tpu.pipeline_mode<synchronous>, transform_indices = @transform_2, window_bounds = array<i64: 1, 1>}]} {
    %c0_i32 = arith.constant 0 : i32
    %0 = arith.cmpi eq, %arg0, %c0_i32 : i32
    %1 = arith.extui %0 : i1 to i32
    %c0_i32_0 = arith.constant 0 : i32
    %2 = arith.cmpi ne, %1, %c0_i32_0 : i32
    scf.if %2 {
      %cst_13 = arith.constant 0.000000e+00 : f32
      %24 = vector.broadcast %cst_13 : f32 to vector<8x128xf32>
      %c0_14 = arith.constant 0 : index
      %c0_15 = arith.constant 0 : index
      %25 = vector.load %arg4[%c0_14, %c0_15] : memref<8x128xf32, #tpu.memory_space<vmem>>, vector<8x128xf32>
      tpu.vector_store %arg4[%c0_14, %c0_15], %24 {strides = array<i32>} : memref<8x128xf32, #tpu.memory_space<vmem>>, vector<8x128xf32>,
    } else {
    }
    %c0 = arith.constant 0 : index
    %c0_1 = arith.constant 0 : index
    %3 = vector.load %arg1[%c0, %c0_1] : memref<16x128xf32, #tpu.memory_space<vmem>>, vector<16x128xf32>
    %c0_2 = arith.constant 0 : index
    %c0_3 = arith.constant 0 : index
    %4 = vector.load %arg2[%c0_2, %c0_3] : memref<16x128xf32, #tpu.memory_space<vmem>>, vector<16x128xf32>
    %5 = arith.subf %3, %4 : vector<16x128xf32>
    %cst = arith.constant 9.99999996E-13 : f32
    %6 = vector.broadcast %cst : f32 to vector<16x128xf32>
    %7 = arith.addf %5, %6 : vector<16x128xf32>
    %8 = math.absf %7 : vector<16x128xf32>
    %cst_4 = arith.constant -2.000000e+00 : f32
    %9 = vector.broadcast %cst_4 : f32 to vector<16x128xf32>
    %10 = arith.mulf %9, %8 : vector<16x128xf32>
    %11 = math.exp %10 : vector<16x128xf32>
    %12 = math.log1p %11 : vector<16x128xf32>
    %13 = arith.addf %8, %12 : vector<16x128xf32>
    %cst_5 = arith.constant 0.693147182 : f32
    %14 = vector.broadcast %cst_5 : f32 to vector<16x128xf32>
    %15 = arith.subf %13, %14 : vector<16x128xf32>
    %c0_6 = arith.constant 0 : index
    %c0_7 = arith.constant 0 : index
    %16 = vector.load %arg4[%c0_6, %c0_7] : memref<8x128xf32, #tpu.memory_space<vmem>>, vector<8x128xf32>
    %17 = vector.shape_cast %15 : vector<16x128xf32> to vector<2x8x128xf32>
    %cst_8 = arith.constant dense<0.000000e+00> : vector<8x128xf32>
    %18 = vector.multi_reduction <add>, %17, %cst_8 [0] : vector<2x8x128xf32> to vector<8x128xf32>
    %19 = arith.addf %16, %18 : vector<8x128xf32>
    %c0_9 = arith.constant 0 : index
    %c0_10 = arith.constant 0 : index
    %20 = vector.load %arg4[%c0_9, %c0_10] : memref<8x128xf32, #tpu.memory_space<vmem>>, vector<8x128xf32>
    tpu.vector_store %arg4[%c0_9, %c0_10], %19 {strides = array<i32>} : memref<8x128xf32, #tpu.memory_space<vmem>>, vector<8x128xf32>,
    %c0_i32_11 = arith.constant 0 : i32
    %21 = arith.cmpi eq, %arg0, %c0_i32_11 : i32
    %22 = arith.extui %21 : i1 to i32
    %c0_i32_12 = arith.constant 0 : i32
    %23 = arith.cmpi ne, %22, %c0_i32_12 : i32
    scf.if %23 {
      %c0_13 = arith.constant 0 : index
      %c0_14 = arith.constant 0 : index
      %24 = vector.load %arg4[%c0_13, %c0_14] : memref<8x128xf32, #tpu.memory_space<vmem>>, vector<8x128xf32>
      %cst_15 = arith.constant dense<0.000000e+00> : vector<8xf32>
      %25 = vector.multi_reduction <add>, %24, %cst_15 [1] : vector<8x128xf32> to vector<8xf32>
      %26 = vector.shape_cast %25 : vector<8xf32> to vector<8x1xf32>
      %cst_16 = arith.constant dense<0.000000e+00> : vector<1xf32>
      %27 = vector.multi_reduction <add>, %26, %cst_16 [0] : vector<8x1xf32> to vector<1xf32>
      %28 = vector.shape_cast %27 : vector<1xf32> to vector<1x1xf32>
      %c0_17 = arith.constant 0 : index
      %c0_18 = arith.constant 0 : index
      %29 = vector.load %arg3[%c0_17, %c0_18] : memref<1x1xf32, #tpu.memory_space<vmem>>, vector<1x1xf32>
      tpu.vector_store %arg3[%c0_17, %c0_18], %28 {strides = array<i32>} : memref<1x1xf32, #tpu.memory_space<vmem>>, vector<1x1xf32>,
    } else {
    }
    return
  }
  func.func @transform_0(%arg0: i32) -> (i32, i32) {
    %c0_i32 = arith.constant 0 : i32
    %c0_i32_0 = arith.constant 0 : i32
    return %arg0, %c0_i32 : i32, i32
  }
  func.func @transform_1(%arg0: i32) -> (i32, i32) {
    %c0_i32 = arith.constant 0 : i32
    %c0_i32_0 = arith.constant 0 : i32
    return %arg0, %c0_i32 : i32, i32
  }
  func.func @transform_2(%arg0: i32) -> (i32, i32) {
    %c0_i32 = arith.constant 0 : i32
    %c0_i32_0 = arith.constant 0 : i32
    %c0_i32_1 = arith.constant 0 : i32
    return %c0_i32, %c0_i32_0 : i32, i32
  }
}

</mosaic_0001>

<llo_original>
// kernel: tpu_custom_call.1
$region0: #{tpu_custom_call.1}
  #allocation0 [shape = 'u32[]', space=smem, size = 0x4, offset = 0x4, fixed_abs, tag = 'smem constant byte address 0x4 - core index']
  #allocation1 [shape = 'u32[144,128]{1,0:T(1,128)}', space=vmem, size = 0x12000, scoped, tag = 'internal scratch']
  #allocation2 [shape = 'f32[8,128]{1,0:T(8,128)}', space=vmem, size = 0x1000, scoped, tag = 'scratch operand']
  %s0 = inlined_call_operand.hbm [shape: f32[16,128], index: 0, kind: input, shape index: {}]
  %s1 = inlined_call_operand.hbm [shape: f32[16,128], index: 1, kind: input, shape index: {}]
  %s2 = inlined_call_operand.hbm [shape: f32[1,1], index: 2, kind: output, shape index: {}]
  %s3 = sld [smem:[#allocation0]]
  $region34: #{tpu_custom_call.1} parent=0
    _
  %s5 = ssub.s32 1, %s3
  %s6 = scalar_select 0, %s5, %s3
  $region1: #{tpu_custom_call.1} parent=0
    #allocation3 [shape = 'u8[8192]{0}', space=vmem, size = 0x2000, scoped, tag = 'input window, operand 0, single buffered']
    #allocation4 [shape = 's32[1]{0}', space=sflag, size = 0x4, scoped, tag = 'scoped memory for tpu_custom_call.1']
    #allocation5 [shape = 's32[1]{0}', space=sflag, size = 0x4, scoped, tag = 'scoped memory for tpu_custom_call.1']
    #allocation6 [shape = 'u8[8192]{0}', space=vmem, size = 0x2000, scoped, tag = 'input window, operand 1, single buffered']
    #allocation7 [shape = 's32[1]{0}', space=sflag, size = 0x4, scoped, tag = 'scoped memory for tpu_custom_call.1']
    #allocation8 [shape = 'u8[512]{0}', space=vmem, size = 0x400, scoped, tag = 'output window, operand 0, single buffered']
    %7 = vsyncpa [#allocation4], 0
    %8 = vsyncpa [#allocation7], 0
    %9 = vsyncpa [#allocation5], 0
    // Predicated region
    $region2: #{tpu_custom_call.1} parent=1 // pred_check
      _
    $region3: #{tpu_custom_call.1} parent=1 // pred_check_branch
      %11 = sbr.rel (0) target = $region5
    $region4: #{tpu_custom_call.1} parent=1 // pred_region
      %s13 = ssub.s32 256, 256
      %14 = vsyncadd [#allocation4], %s13
      %s15 = sshll.u32 [#allocation3], 4
      %s16 = int_to_ptr.vmem [resolvable:$true] %s15
      %21 = dma.hbm_to_vmem [thread:$0]  %s0, 256, %s16, [#allocation4], 128, 128, 8
    $region5: #{tpu_custom_call.1} parent=1 // pred_fallthru
      _
    // Predicated region
    $region6: #{tpu_custom_call.1} parent=1 // pred_check
      _
    $region7: #{tpu_custom_call.1} parent=1 // pred_check_branch
      %23 = sbr.rel (0) target = $region9
    $region8: #{tpu_custom_call.1} parent=1 // pred_region
      %s25 = ssub.s32 256, 256
      %26 = vsyncadd [#allocation7], %s25
      %s27 = sshll.u32 [#allocation6], 4
      %s28 = int_to_ptr.vmem [resolvable:$true] %s27
      %33 = dma.hbm_to_vmem [thread:$0]  %s1, 256, %s28, [#allocation7], 128, 128, 8
    $region9: #{tpu_custom_call.1} parent=1 // pred_fallthru
      _
    // Predicated region
    $region10: #{tpu_custom_call.1} parent=1 // pred_check
      _
    $region11: #{tpu_custom_call.1} parent=1 // pred_check_branch
      %35 = sbr.rel (0) target = $region13
    $region12: #{tpu_custom_call.1} parent=1 // pred_region
      %36 = dma.done [#allocation4], 256
    $region13: #{tpu_custom_call.1} parent=1 // pred_fallthru
      _
    // Predicated region
    $region14: #{tpu_custom_call.1} parent=1 // pred_check
      _
    $region15: #{tpu_custom_call.1} parent=1 // pred_check_branch
      %38 = sbr.rel (0) target = $region17
    $region16: #{tpu_custom_call.1} parent=1 // pred_region
      %39 = dma.done [#allocation7], 256
    $region17: #{tpu_custom_call.1} parent=1 // pred_fallthru
      _
    %p40 = scmp.eq.s32.totalorder 0, 0
    // Predicated region
    $region18: #{tpu_custom_call.1} parent=1 // pred_check
      %p41 = pneg %p40
    $region19: #{tpu_custom_call.1} parent=1 // pred_check_branch
      %43 = sbr.rel (%p41) target = $region21
    $region20: #{tpu_custom_call.1} parent=1 // pred_region
      %44 = vst [vmem:[#allocation2] sm:$0xff] 0.0
    $region21: #{tpu_custom_call.1} parent=1 // pred_fallthru
      _
    %v45 = vld [vmem:[#allocation3] sm:$0xff]
    %v46 = vld [vmem:[#allocation3 + $0x8] sm:$0xff]
    %v47 = vld [vmem:[#allocation6] sm:$0xff]
    %v48 = vld [vmem:[#allocation6 + $0x8] sm:$0xff]
    %v49 = vsub.f32 %v45, %v47
    %v50 = vsub.f32 %v46, %v48
    %v51 = vadd.f32 %v49, 1e-12
    %v52 = vadd.f32 %v50, 1e-12
    %v53 = vand.u32 2147483647, %v51
    %v54 = vand.u32 2147483647, %v52
    %v55 = vmul.f32 %v53, -2.0
    %v56 = vmul.f32 %v54, -2.0
    %v57 = vmul.f32 %v55, 1.442695
    %v58 = vpow.pop %v57
    %v59 = vmul.f32 %v56, 1.442695
    %v60 = vpow.pop %v59
    %v61 = vadd.f32 %v58, 1.0
    %v62 = vlog2.pop %v61
    %v63 = vmul.f32 %v62, 0.6931472
    %v64 = vmul.f32 -0.5, %v58
    %v65 = vadd.f32 %v64, 1.0
    %v66 = vmul.f32 %v65, %v58
    %v67 = vand.u32 2147483647, %v58
    %vm68 = vcmp.lt.f32.partialorder %v67, 0.0004427343
    %v69 = vsel %vm68, %v66, %v63
    %v70 = vadd.f32 %v60, 1.0
    %v71 = vlog2.pop %v70
    %v72 = vmul.f32 %v71, 0.6931472
    %v73 = vmul.f32 -0.5, %v60
    %v74 = vadd.f32 %v73, 1.0
    %v75 = vmul.f32 %v74, %v60
    %v76 = vand.u32 2147483647, %v60
    %vm77 = vcmp.lt.f32.partialorder %v76, 0.0004427343
    %v78 = vsel %vm77, %v75, %v72
    %v79 = vadd.f32 %v53, %v69
    %v80 = vadd.f32 %v54, %v78
    %v81 = vsub.f32 %v79, 0.6931472
    %v82 = vsub.f32 %v80, 0.6931472
    %v83 = vld [vmem:[#allocation2] sm:$0xff]
    %v84 = vadd.f32 %v81, %v82
    %v85 = vadd.f32 %v83, %v84
    %86 = vst [vmem:[#allocation2] sm:$0xff] %v85
    // Predicated region
    $region22: #{tpu_custom_call.1} parent=1 // pred_check
      %p87 = pneg %p40
    $region23: #{tpu_custom_call.1} parent=1 // pred_check_branch
      %89 = sbr.rel (%p87) target = $region25
    $region24: #{tpu_custom_call.1} parent=1 // pred_region
      %v90 = vld [vmem:[#allocation2] sm:$0xff]
      %91 = vadd.xlane.f32.xlu0 %v90
      %v92 = vpop.xlane.xlu0 %91
      %v93 = vrot.slane %v92, 4
      %v94 = vadd.f32 %v92, %v93
      %v95 = vrot.slane %v94, 2
      %v96 = vadd.f32 %v94, %v95
      %v97 = vrot.slane %v96, 1
      %v98 = vadd.f32 %v96, %v97
      %vm99 = vcmask 0
      %100 = vst.msk [vmem:[#allocation8] sm:$0x1] %vm99, %v98
    $region25: #{tpu_custom_call.1} parent=1 // pred_fallthru
      _
    // Predicated region
    $region26: #{tpu_custom_call.1} parent=1 // pred_check
      _
    $region27: #{tpu_custom_call.1} parent=1 // pred_check_branch
      %102 = sbr.rel (0) target = $region29
    $region28: #{tpu_custom_call.1} parent=1 // pred_region
      %s104 = ssub.s32 16, 16
      %105 = vsyncadd [#allocation5], %s104
      %s107 = sshll.u32 [#allocation8], 4
      %s108 = int_to_ptr.vmem [resolvable:$true] %s107
      %110 = dma.vmem_to_hbm [thread:$0]  %s108, 16, %s2, [#allocation5]
    $region29: #{tpu_custom_call.1} parent=1 // pred_fallthru
      _
    // Predicated region
    $region30: #{tpu_custom_call.1} parent=1 // pred_check
      _
    $region31: #{tpu_custom_call.1} parent=1 // pred_check_branch
      %112 = sbr.rel (0) target = $region33
    $region32: #{tpu_custom_call.1} parent=1 // pred_region
      %113 = dma.done [#allocation5], 16
    $region33: #{tpu_custom_call.1} parent=1 // pred_fallthru
      _
    %114 = vsyncpa [#allocation4], 1
    %115 = vsyncpa [#allocation7], 1
    %116 = vsyncpa [#allocation5], 1

</llo_original>
